<compile_context>
chip_gen: v7x
topology: tpu7x:2x2x1
jax: 0.10.0
libtpu: 0.0.40
codegen_flags: <defaults>
</compile_context>

<pallas_src>
import math
import jax
import jax.numpy as jnp
from jax.experimental import pallas as pl
from jax.experimental.pallas import tpu as pltpu

# Coefficients from BaGTI's constants module (deterministic, defined in-script).
COEFF_ENERGY = 0.5
COEFF_LATENCY = 0.5

ROWS, COLS = 10, 12
IN_DIM = ROWS * COLS          # 120 (multiple of 8 -> no contraction padding needed)
H1, H2, H3, OUT = 128, 128, 64, 2
H3_PAD, OUT_PAD = 128, 128    # pad the narrow tail layers once, at prep time
TM_MAX = 256                  # batch tile: fills a 256-row MXU pass on v6e/v7x, fine on v5e


def _round_up(n, m):
    return ((n + m - 1) // m) * m


def _mlp_kernel(x_ref, w1_ref, b1_ref, w2_ref, b2_ref, w3_ref, b3_ref,
                w4_ref, b4_ref, coeff_ref, out_ref):
    def softplus(v):
        # numerically stable, matches torch.nn.Softplus(beta=1)
        return jnp.maximum(v, 0.0) + jnp.log1p(jnp.exp(-jnp.abs(v)))

    h = jnp.dot(x_ref[...], w1_ref[...], preferred_element_type=jnp.float32) + b1_ref[...]
    h = softplus(h)                                            # (TM, 128)

    h = jnp.dot(h, w2_ref[...], preferred_element_type=jnp.float32) + b2_ref[...]
    h = softplus(h)                                            # (TM, 128)

    h = jnp.dot(h, w3_ref[...], preferred_element_type=jnp.float32) + b3_ref[...]
    h = h - jnp.tanh(h)                                        # Tanhshrink; padded cols stay 0

    h = jnp.dot(h, w4_ref[...], preferred_element_type=jnp.float32) + b4_ref[...]
    h = 1.0 / (1.0 + jnp.exp(-h))                              # Sigmoid; padded lanes hit coeff 0

    # (TM, 128) @ (128, 1) -> (TM, 1): Coeff_Energy*y0 + Coeff_Latency*y1 per row
    out_ref[...] = jnp.dot(h, coeff_ref[...], preferred_element_type=jnp.float32)


def _pad2(a, rows, cols):
    out = jnp.zeros((rows, cols), jnp.float32)
    return out.at[:a.shape[0], :a.shape[1]].set(a.astype(jnp.float32))


def prepare_params(params):
    """One-time parameter preparation (call once, outside the per-forward path)."""
    w1 = params["w1"].astype(jnp.float32)                      # (120, 128) unpadded
    b1 = params["b1"].reshape(1, H1).astype(jnp.float32)
    w2 = params["w2"].astype(jnp.float32)                      # (128, 128)
    b2 = params["b2"].reshape(1, H2).astype(jnp.float32)
    w3 = _pad2(params["w3"], H2, H3_PAD)                       # (128, 128)
    b3 = _pad2(params["b3"].reshape(1, -1), 1, H3_PAD)
    w4 = _pad2(params["w4"], H3_PAD, OUT_PAD)                  # (128, 128)
    b4 = _pad2(params["b4"].reshape(1, -1), 1, OUT_PAD)
    coeff = (jnp.zeros((OUT_PAD, 1), jnp.float32)
             .at[0, 0].set(COEFF_ENERGY)
             .at[1, 0].set(COEFF_LATENCY))
    return (w1, b1, w2, b2, w3, b3, w4, b4, coeff)


def energy_latency_10_forward(x, prepared):
    """x: (B, 10, 12) or (10, 12) float32. Returns (B,) or a scalar."""
    single = (x.ndim == 2)
    if single:
        x = x[None]
    B = x.shape[0]
    x_flat = x.reshape(B, IN_DIM).astype(jnp.float32)

    tm = min(TM_MAX, _round_up(B, 8))
    b_pad = _round_up(B, tm)
    if b_pad != B:
        x_flat = jnp.pad(x_flat, ((0, b_pad - B), (0, 0)))
    n_tiles = b_pad // tm

    w1, b1, w2, b2, w3, b3, w4, b4, coeff = prepared

    # Weights/biases: constant index_map -> resident in VMEM across the batch grid.
    def const(shape):
        return pl.BlockSpec(shape, lambda i: (0, 0))

    out = pl.pallas_call(
        _mlp_kernel,
        out_shape=jax.ShapeDtypeStruct((b_pad, 1), jnp.float32),
        grid=(n_tiles,),
        in_specs=[
            pl.BlockSpec((tm, IN_DIM), lambda i: (i, 0)),      # x tile streams
            const((IN_DIM, H1)), const((1, H1)),
            const((H1, H2)), const((1, H2)),
            const((H2, H3_PAD)), const((1, H3_PAD)),
            const((H3_PAD, OUT_PAD)), const((1, OUT_PAD)),
            const((OUT_PAD, 1)),
        ],
        out_specs=pl.BlockSpec((tm, 1), lambda i: (i, 0)),
        compiler_params=pltpu.CompilerParams(
            dimension_semantics=("parallel",)),                # shards across TCs on v7x
    )(x_flat, w1, b1, w2, b2, w3, b3, w4, b4, coeff)

    result = out[:B, 0]
    return result[0] if single else result


def init_params(key):
    """Deterministic init mimicking torch.nn.Linear default (U[-1/sqrt(fan_in), ...]).
    Weights stored as (in_features, out_features)."""
    dims = [(IN_DIM, H1), (H1, H2), (H2, H3), (H3, OUT)]
    params = {}
    keys = jax.random.split(key, 2 * len(dims))
    for i, (fin, fout) in enumerate(dims):
        bound = 1.0 / math.sqrt(fin)
        params[f"w{i+1}"] = jax.random.uniform(keys[2 * i], (fin, fout),
                                               jnp.float32, -bound, bound)
        params[f"b{i+1}"] = jax.random.uniform(keys[2 * i + 1], (fout,),
                                               jnp.float32, -bound, bound)
    return params


def reference_forward(x, params):
    h = x.reshape(-1).astype(jnp.float32)
    h = jax.nn.softplus(h @ params["w1"] + params["b1"])
    h = jax.nn.softplus(h @ params["w2"] + params["b2"])
    h = h @ params["w3"] + params["b3"]
    h = h - jnp.tanh(h)
    h = jax.nn.sigmoid(h @ params["w4"] + params["b4"])
    return COEFF_ENERGY * h[0] + COEFF_LATENCY * h[1]


if __name__ == "__main__":
    key = jax.random.PRNGKey(0)
    k_x, k_p = jax.random.split(key)

    B = 16
    x = jax.random.uniform(k_x, (B, ROWS, COLS), jnp.float32)  # batch of scheduler states
    params = init_params(k_p)
    prepared = prepare_params(params)                          # one-time padding/layout

    out = energy_latency_10_forward(x, prepared)
    out = jax.block_until_ready(out)

    ref = jax.vmap(lambda xi: reference_forward(xi, params))(x)
    assert out.shape == (B,)
    assert jnp.allclose(out, ref, atol=1e-5, rtol=1e-5), (out, ref)

    # Single-sample path (matches the PyTorch module's scalar output).
    out1 = jax.block_until_ready(energy_latency_10_forward(x[0], prepared))
    assert jnp.allclose(out1, ref[0], atol=1e-5, rtol=1e-5), (out1, ref[0])

    print("KERNEL_OK")
</pallas_src>

<mosaic_0001>
module attributes {stable_mosaic.version = 11 : i64} {
  func.func @_mlp_kernel(%arg0: i32, %arg1: memref<16x120xf32, #tpu.memory_space<vmem>>, %arg2: memref<120x128xf32, #tpu.memory_space<vmem>>, %arg3: memref<1x128xf32, #tpu.memory_space<vmem>>, %arg4: memref<128x128xf32, #tpu.memory_space<vmem>>, %arg5: memref<1x128xf32, #tpu.memory_space<vmem>>, %arg6: memref<128x128xf32, #tpu.memory_space<vmem>>, %arg7: memref<1x128xf32, #tpu.memory_space<vmem>>, %arg8: memref<128x128xf32, #tpu.memory_space<vmem>>, %arg9: memref<1x128xf32, #tpu.memory_space<vmem>>, %arg10: memref<128x1xf32, #tpu.memory_space<vmem>>, %arg11: memref<16x1xf32, #tpu.memory_space<vmem>>) attributes {dimension_semantics = [#tpu.dimension_semantics<parallel>], iteration_bounds = array<i64: 1>, scalar_prefetch = 0 : i64, scratch_operands = 0 : i64, tpu.core_type = #tpu.core_type<tc>, window_params = [{transform_indices = @transform_0, window_bounds = array<i64: 16, 120>}, {pipeline_mode = #tpu.pipeline_mode<synchronous>, transform_indices = @transform_1, window_bounds = array<i64: 120, 128>}, {pipeline_mode = #tpu.pipeline_mode<synchronous>, transform_indices = @transform_2, window_bounds = array<i64: 1, 128>}, {pipeline_mode = #tpu.pipeline_mode<synchronous>, transform_indices = @transform_3, window_bounds = array<i64: 128, 128>}, {pipeline_mode = #tpu.pipeline_mode<synchronous>, transform_indices = @transform_4, window_bounds = array<i64: 1, 128>}, {pipeline_mode = #tpu.pipeline_mode<synchronous>, transform_indices = @transform_5, window_bounds = array<i64: 128, 128>}, {pipeline_mode = #tpu.pipeline_mode<synchronous>, transform_indices = @transform_6, window_bounds = array<i64: 1, 128>}, {pipeline_mode = #tpu.pipeline_mode<synchronous>, transform_indices = @transform_7, window_bounds = array<i64: 128, 128>}, {pipeline_mode = #tpu.pipeline_mode<synchronous>, transform_indices = @transform_8, window_bounds = array<i64: 1, 128>}, {pipeline_mode = #tpu.pipeline_mode<synchronous>, transform_indices = @transform_9, window_bounds = array<i64: 128, 1>}, {transform_indices = @transform_10, window_bounds = array<i64: 16, 1>}]} {
    %c0 = arith.constant 0 : index
    %c0_0 = arith.constant 0 : index
    %0 = vector.load %arg1[%c0, %c0_0] : memref<16x120xf32, #tpu.memory_space<vmem>>, vector<16x120xf32>
    %c0_1 = arith.constant 0 : index
    %c0_2 = arith.constant 0 : index
    %1 = vector.load %arg2[%c0_1, %c0_2] : memref<120x128xf32, #tpu.memory_space<vmem>>, vector<120x128xf32>
    %cst = arith.constant dense<0.000000e+00> : vector<16x128xf32>
    %2 = tpu.matmul %0, %1, %cst {dimension_numbers = #tpu.dot_dimension_numbers<[1], [0], [0], [1], [0, 0, 1, 1], [], []>} : vector<16x120xf32>, vector<120x128xf32>, vector<16x128xf32> -> vector<16x128xf32>
    %c0_3 = arith.constant 0 : index
    %c0_4 = arith.constant 0 : index
    %3 = vector.load %arg3[%c0_3, %c0_4] : memref<1x128xf32, #tpu.memory_space<vmem>>, vector<1x128xf32>
    %4 = vector.broadcast %3 : vector<1x128xf32> to vector<16x128xf32>
    %5 = arith.addf %2, %4 : vector<16x128xf32>
    %cst_5 = arith.constant 0.000000e+00 : f32
    %6 = vector.broadcast %cst_5 : f32 to vector<16x128xf32>
    %7 = arith.maximumf %5, %6 : vector<16x128xf32>
    %8 = math.absf %5 : vector<16x128xf32>
    %cst_6 = arith.constant 0.000000e+00 : f32
    %9 = vector.broadcast %cst_6 : f32 to vector<16x128xf32>
    %10 = arith.subf %9, %8 : vector<16x128xf32>
    %11 = math.exp %10 : vector<16x128xf32>
    %12 = math.log1p %11 : vector<16x128xf32>
    %13 = arith.addf %7, %12 : vector<16x128xf32>
    %c0_7 = arith.constant 0 : index
    %c0_8 = arith.constant 0 : index
    %14 = vector.load %arg4[%c0_7, %c0_8] : memref<128x128xf32, #tpu.memory_space<vmem>>, vector<128x128xf32>
    %cst_9 = arith.constant dense<0.000000e+00> : vector<16x128xf32>
    %15 = tpu.matmul %13, %14, %cst_9 {dimension_numbers = #tpu.dot_dimension_numbers<[1], [0], [0], [1], [0, 0, 1, 1], [], []>} : vector<16x128xf32>, vector<128x128xf32>, vector<16x128xf32> -> vector<16x128xf32>
    %c0_10 = arith.constant 0 : index
    %c0_11 = arith.constant 0 : index
    %16 = vector.load %arg5[%c0_10, %c0_11] : memref<1x128xf32, #tpu.memory_space<vmem>>, vector<1x128xf32>
    %17 = vector.broadcast %16 : vector<1x128xf32> to vector<16x128xf32>
    %18 = arith.addf %15, %17 : vector<16x128xf32>
    %cst_12 = arith.constant 0.000000e+00 : f32
    %19 = vector.broadcast %cst_12 : f32 to vector<16x128xf32>
    %20 = arith.maximumf %18, %19 : vector<16x128xf32>
    %21 = math.absf %18 : vector<16x128xf32>
    %cst_13 = arith.constant 0.000000e+00 : f32
    %22 = vector.broadcast %cst_13 : f32 to vector<16x128xf32>
    %23 = arith.subf %22, %21 : vector<16x128xf32>
    %24 = math.exp %23 : vector<16x128xf32>
    %25 = math.log1p %24 : vector<16x128xf32>
    %26 = arith.addf %20, %25 : vector<16x128xf32>
    %c0_14 = arith.constant 0 : index
    %c0_15 = arith.constant 0 : index
    %27 = vector.load %arg6[%c0_14, %c0_15] : memref<128x128xf32, #tpu.memory_space<vmem>>, vector<128x128xf32>
    %cst_16 = arith.constant dense<0.000000e+00> : vector<16x128xf32>
    %28 = tpu.matmul %26, %27, %cst_16 {dimension_numbers = #tpu.dot_dimension_numbers<[1], [0], [0], [1], [0, 0, 1, 1], [], []>} : vector<16x128xf32>, vector<128x128xf32>, vector<16x128xf32> -> vector<16x128xf32>
    %c0_17 = arith.constant 0 : index
    %c0_18 = arith.constant 0 : index
    %29 = vector.load %arg7[%c0_17, %c0_18] : memref<1x128xf32, #tpu.memory_space<vmem>>, vector<1x128xf32>
    %30 = vector.broadcast %29 : vector<1x128xf32> to vector<16x128xf32>
    %31 = arith.addf %28, %30 : vector<16x128xf32>
    %32 = math.tanh %31 : vector<16x128xf32>
    %33 = arith.subf %31, %32 : vector<16x128xf32>
    %c0_19 = arith.constant 0 : index
    %c0_20 = arith.constant 0 : index
    %34 = vector.load %arg8[%c0_19, %c0_20] : memref<128x128xf32, #tpu.memory_space<vmem>>, vector<128x128xf32>
    %cst_21 = arith.constant dense<0.000000e+00> : vector<16x128xf32>
    %35 = tpu.matmul %33, %34, %cst_21 {dimension_numbers = #tpu.dot_dimension_numbers<[1], [0], [0], [1], [0, 0, 1, 1], [], []>} : vector<16x128xf32>, vector<128x128xf32>, vector<16x128xf32> -> vector<16x128xf32>
    %c0_22 = arith.constant 0 : index
    %c0_23 = arith.constant 0 : index
    %36 = vector.load %arg9[%c0_22, %c0_23] : memref<1x128xf32, #tpu.memory_space<vmem>>, vector<1x128xf32>
    %37 = vector.broadcast %36 : vector<1x128xf32> to vector<16x128xf32>
    %38 = arith.addf %35, %37 : vector<16x128xf32>
    %cst_24 = arith.constant 0.000000e+00 : f32
    %39 = vector.broadcast %cst_24 : f32 to vector<16x128xf32>
    %40 = arith.subf %39, %38 : vector<16x128xf32>
    %41 = math.exp %40 : vector<16x128xf32>
    %cst_25 = arith.constant 1.000000e+00 : f32
    %42 = vector.broadcast %cst_25 : f32 to vector<16x128xf32>
    %43 = arith.addf %42, %41 : vector<16x128xf32>
    %cst_26 = arith.constant 1.000000e+00 : f32
    %44 = vector.broadcast %cst_26 : f32 to vector<16x128xf32>
    %45 = arith.divf %44, %43 : vector<16x128xf32>
    %c0_27 = arith.constant 0 : index
    %c0_28 = arith.constant 0 : index
    %46 = vector.load %arg10[%c0_27, %c0_28] : memref<128x1xf32, #tpu.memory_space<vmem>>, vector<128x1xf32>
    %cst_29 = arith.constant dense<0.000000e+00> : vector<16x1xf32>
    %47 = tpu.matmul %45, %46, %cst_29 {dimension_numbers = #tpu.dot_dimension_numbers<[1], [0], [0], [1], [0, 0, 1, 1], [], []>} : vector<16x128xf32>, vector<128x1xf32>, vector<16x1xf32> -> vector<16x1xf32>
    %c0_30 = arith.constant 0 : index
    %c0_31 = arith.constant 0 : index
    %48 = vector.load %arg11[%c0_30, %c0_31] : memref<16x1xf32, #tpu.memory_space<vmem>>, vector<16x1xf32>
    tpu.vector_store %arg11[%c0_30, %c0_31], %47 {strides = array<i32>} : memref<16x1xf32, #tpu.memory_space<vmem>>, vector<16x1xf32>,
    return
  }
  func.func @transform_0(%arg0: i32) -> (i32, i32) {
    %c0_i32 = arith.constant 0 : i32
    %c0_i32_0 = arith.constant 0 : i32
    return %arg0, %c0_i32 : i32, i32
  }
  func.func @transform_1(%arg0: i32) -> (i32, i32) {
    %c0_i32 = arith.constant 0 : i32
    %c0_i32_0 = arith.constant 0 : i32
    %c0_i32_1 = arith.constant 0 : i32
    return %c0_i32, %c0_i32_0 : i32, i32
  }
  func.func @transform_2(%arg0: i32) -> (i32, i32) {
    %c0_i32 = arith.constant 0 : i32
    %c0_i32_0 = arith.constant 0 : i32
    %c0_i32_1 = arith.constant 0 : i32
    return %c0_i32, %c0_i32_0 : i32, i32
  }
  func.func @transform_3(%arg0: i32) -> (i32, i32) {
    %c0_i32 = arith.constant 0 : i32
    %c0_i32_0 = arith.constant 0 : i32
    %c0_i32_1 = arith.constant 0 : i32
    return %c0_i32, %c0_i32_0 : i32, i32
  }
  func.func @transform_4(%arg0: i32) -> (i32, i32) {
    %c0_i32 = arith.constant 0 : i32
    %c0_i32_0 = arith.constant 0 : i32
    %c0_i32_1 = arith.constant 0 : i32
    return %c0_i32, %c0_i32_0 : i32, i32
  }
  func.func @transform_5(%arg0: i32) -> (i32, i32) {
    %c0_i32 = arith.constant 0 : i32
    %c0_i32_0 = arith.constant 0 : i32
    %c0_i32_1 = arith.constant 0 : i32
    return %c0_i32, %c0_i32_0 : i32, i32
  }
  func.func @transform_6(%arg0: i32) -> (i32, i32) {
    %c0_i32 = arith.constant 0 : i32
    %c0_i32_0 = arith.constant 0 : i32
    %c0_i32_1 = arith.constant 0 : i32
    return %c0_i32, %c0_i32_0 : i32, i32
  }
  func.func @transform_7(%arg0: i32) -> (i32, i32) {
    %c0_i32 = arith.constant 0 : i32
    %c0_i32_0 = arith.constant 0 : i32
    %c0_i32_1 = arith.constant 0 : i32
    return %c0_i32, %c0_i32_0 : i32, i32
  }
  func.func @transform_8(%arg0: i32) -> (i32, i32) {
    %c0_i32 = arith.constant 0 : i32
    %c0_i32_0 = arith.constant 0 : i32
    %c0_i32_1 = arith.constant 0 : i32
    return %c0_i32, %c0_i32_0 : i32, i32
  }
  func.func @transform_9(%arg0: i32) -> (i32, i32) {
    %c0_i32 = arith.constant 0 : i32
    %c0_i32_0 = arith.constant 0 : i32
    %c0_i32_1 = arith.constant 0 : i32
    return %c0_i32, %c0_i32_0 : i32, i32
  }
  func.func @transform_10(%arg0: i32) -> (i32, i32) {
    %c0_i32 = arith.constant 0 : i32
    %c0_i32_0 = arith.constant 0 : i32
    return %arg0, %c0_i32 : i32, i32
  }
}

</mosaic_0001>

<llo_original>
// kernel: tpu_custom_call.1
$region0: #{tpu_custom_call.1}
  #allocation0 [shape = 'u32[]', space=smem, size = 0x4, offset = 0x4, fixed_abs, tag = 'smem constant byte address 0x4 - core index']
  #allocation1 [shape = 'u32[144,128]{1,0:T(1,128)}', space=vmem, size = 0x12000, scoped, tag = 'internal scratch']
  %s0 = inlined_call_operand.hbm [shape: f32[16,120], index: 0, kind: input, shape index: {}]
  %s1 = inlined_call_operand.hbm [shape: f32[120,128], index: 1, kind: input, shape index: {}]
  %s2 = inlined_call_operand.vmem [shape: f32[1,128], index: 2, kind: input, shape index: {}]
  %s3 = inlined_call_operand.vmem [shape: f32[128,128], index: 3, kind: input, shape index: {}]
  %s4 = inlined_call_operand.vmem [shape: f32[1,128], index: 4, kind: input, shape index: {}]
  %s5 = inlined_call_operand.hbm [shape: f32[128,128], index: 5, kind: input, shape index: {}]
  %s6 = inlined_call_operand.vmem [shape: f32[1,128], index: 6, kind: input, shape index: {}]
  %s7 = inlined_call_operand.hbm [shape: f32[128,128], index: 7, kind: input, shape index: {}]
  %s8 = inlined_call_operand.vmem [shape: f32[1,128], index: 8, kind: input, shape index: {}]
  %s9 = inlined_call_operand.vmem [shape: f32[128,1], index: 9, kind: input, shape index: {}]
  %s10 = inlined_call_operand.vmem [shape: f32[16,1], index: 10, kind: output, shape index: {}]
  %s11 = sld [smem:[#allocation0]]
  $region66: #{tpu_custom_call.1} parent=0
    _
  %s13 = ssub.s32 1, %s11
  %s14 = scalar_select 0, %s13, %s11
  $region1: #{tpu_custom_call.1} parent=0
    #allocation2 [shape = 'u8[8192]{0}', space=vmem, size = 0x2000, scoped, tag = 'input window, operand 0, single buffered']
    #allocation3 [shape = 's32[1]{0}', space=sflag, size = 0x4, scoped, tag = 'scoped memory for tpu_custom_call.1']
    #allocation4 [shape = 'u8[61440]{0}', space=vmem, size = 0xf000, scoped, tag = 'input window, operand 1, single buffered']
    #allocation5 [shape = 's32[1]{0}', space=sflag, size = 0x4, scoped, tag = 'scoped memory for tpu_custom_call.1']
    #allocation6 [shape = 'u8[65536]{0}', space=vmem, size = 0x10000, scoped, tag = 'input window, operand 5, single buffered']
    #allocation7 [shape = 'u8[65536]{0}', space=vmem, size = 0x10000, scoped, tag = 'input window, operand 7, single buffered']
    #allocation8 [shape = 's32[1]{0}', space=sflag, size = 0x4, scoped, tag = 'scoped memory for tpu_custom_call.1']
    %15 = vsyncpa [#allocation3], 0
    %16 = vsyncpa [#allocation5], 0
    %17 = vsyncpa [#allocation8], 0
    // Predicated region
    $region2: #{tpu_custom_call.1} parent=1 // pred_check
      _
    $region3: #{tpu_custom_call.1} parent=1 // pred_check_branch
      %19 = sbr.rel (0) target = $region5
    $region4: #{tpu_custom_call.1} parent=1 // pred_region
      %s21 = ssub.s32 256, 256
      %22 = vsyncadd [#allocation3], %s21
      %s23 = sshll.u32 [#allocation2], 4
      %s24 = int_to_ptr.vmem [resolvable:$true] %s23
      %29 = dma.hbm_to_vmem [thread:$0]  %s0, 256, %s24, [#allocation3], 128, 128, 8
    $region5: #{tpu_custom_call.1} parent=1 // pred_fallthru
      _
    // Predicated region
    $region6: #{tpu_custom_call.1} parent=1 // pred_check
      _
    $region7: #{tpu_custom_call.1} parent=1 // pred_check_branch
      %31 = sbr.rel (0) target = $region9
    $region8: #{tpu_custom_call.1} parent=1 // pred_region
      %s33 = ssub.s32 1920, 1920
      %34 = vsyncadd [#allocation5], %s33
      %s35 = sshll.u32 [#allocation4], 4
      %s36 = int_to_ptr.vmem [resolvable:$true] %s35
      %41 = dma.hbm_to_vmem [thread:$0]  %s1, 1920, %s36, [#allocation5], 128, 128, 8
    $region9: #{tpu_custom_call.1} parent=1 // pred_fallthru
      _
    // Predicated region
    $region10: #{tpu_custom_call.1} parent=1 // pred_check
      _
    $region11: #{tpu_custom_call.1} parent=1 // pred_check_branch
      %43 = sbr.rel (0) target = $region13
    $region12: #{tpu_custom_call.1} parent=1 // pred_region
      _
    $region13: #{tpu_custom_call.1} parent=1 // pred_fallthru
      _
    // Predicated region
    $region14: #{tpu_custom_call.1} parent=1 // pred_check
      _
    $region15: #{tpu_custom_call.1} parent=1 // pred_check_branch
      %45 = sbr.rel (0) target = $region17
    $region16: #{tpu_custom_call.1} parent=1 // pred_region
      _
    $region17: #{tpu_custom_call.1} parent=1 // pred_fallthru
      _
    // Predicated region
    $region18: #{tpu_custom_call.1} parent=1 // pred_check
      _
    $region19: #{tpu_custom_call.1} parent=1 // pred_check_branch
      %47 = sbr.rel (0) target = $region21
    $region20: #{tpu_custom_call.1} parent=1 // pred_region
      _
    $region21: #{tpu_custom_call.1} parent=1 // pred_fallthru
      _
    // Predicated region
    $region22: #{tpu_custom_call.1} parent=1 // pred_check
      _
    $region23: #{tpu_custom_call.1} parent=1 // pred_check_branch
      %49 = sbr.rel (0) target = $region25
    $region24: #{tpu_custom_call.1} parent=1 // pred_region
      %s51 = ssub.s32 2048, 2048
      %52 = vsyncadd [#allocation5], %s51
      %s53 = sshll.u32 [#allocation6], 4
      %s54 = int_to_ptr.vmem [resolvable:$true] %s53
      %59 = dma.hbm_to_vmem [thread:$0]  %s5, 2048, %s54, [#allocation5], 128, 128, 8
    $region25: #{tpu_custom_call.1} parent=1 // pred_fallthru
      _
    // Predicated region
    $region26: #{tpu_custom_call.1} parent=1 // pred_check
      _
    $region27: #{tpu_custom_call.1} parent=1 // pred_check_branch
      %61 = sbr.rel (0) target = $region29
    $region28: #{tpu_custom_call.1} parent=1 // pred_region
      _
    $region29: #{tpu_custom_call.1} parent=1 // pred_fallthru
      _
    // Predicated region
    $region30: #{tpu_custom_call.1} parent=1 // pred_check
      _
    $region31: #{tpu_custom_call.1} parent=1 // pred_check_branch
      %63 = sbr.rel (0) target = $region33
    $region32: #{tpu_custom_call.1} parent=1 // pred_region
      %s65 = ssub.s32 2048, 2048
      %66 = vsyncadd [#allocation8], %s65
      %s67 = sshll.u32 [#allocation7], 4
      %s68 = int_to_ptr.vmem [resolvable:$true] %s67
      %73 = dma.hbm_to_vmem [thread:$0]  %s7, 2048, %s68, [#allocation8], 128, 128, 8
    $region33: #{tpu_custom_call.1} parent=1 // pred_fallthru
      _
    // Predicated region
    $region34: #{tpu_custom_call.1} parent=1 // pred_check
      _
    $region35: #{tpu_custom_call.1} parent=1 // pred_check_branch
      %75 = sbr.rel (0) target = $region37
    $region36: #{tpu_custom_call.1} parent=1 // pred_region
      _
    $region37: #{tpu_custom_call.1} parent=1 // pred_fallthru
      _
    // Predicated region
    $region38: #{tpu_custom_call.1} parent=1 // pred_check
      _
    $region39: #{tpu_custom_call.1} parent=1 // pred_check_branch
      %77 = sbr.rel (0) target = $region41
    $region40: #{tpu_custom_call.1} parent=1 // pred_region
      _
    $region41: #{tpu_custom_call.1} parent=1 // pred_fallthru
      _
    // Predicated region
    $region42: #{tpu_custom_call.1} parent=1 // pred_check
      _
    $region43: #{tpu_custom_call.1} parent=1 // pred_check_branch
      %79 = sbr.rel (0) target = $region45
    $region44: #{tpu_custom_call.1} parent=1 // pred_region
      %80 = dma.done [#allocation3], 256
    $region45: #{tpu_custom_call.1} parent=1 // pred_fallthru
      _
    // Predicated region
    $region46: #{tpu_custom_call.1} parent=1 // pred_check
      _
    $region47: #{tpu_custom_call.1} parent=1 // pred_check_branch
      %82 = sbr.rel (0) target = $region49
    $region48: #{tpu_custom_call.1} parent=1 // pred_region
      %83 = dma.done [#allocation5], 1920
    $region49: #{tpu_custom_call.1} parent=1 // pred_fallthru
      _
    // Predicated region
    $region50: #{tpu_custom_call.1} parent=1 // pred_check
      _
    $region51: #{tpu_custom_call.1} parent=1 // pred_check_branch
      %85 = sbr.rel (0) target = $region53
    $region52: #{tpu_custom_call.1} parent=1 // pred_region
      %86 = dma.done [#allocation5], 2048
    $region53: #{tpu_custom_call.1} parent=1 // pred_fallthru
      _
    // Predicated region
    $region54: #{tpu_custom_call.1} parent=1 // pred_check
      _
    $region55: #{tpu_custom_call.1} parent=1 // pred_check_branch
      %88 = sbr.rel (0) target = $region57
    $region56: #{tpu_custom_call.1} parent=1 // pred_region
      %89 = dma.done [#allocation8], 2048
    $region57: #{tpu_custom_call.1} parent=1 // pred_fallthru
      _
    %v90 = vld [vmem:[#allocation2] sm:$0xff]
    %v91 = vld [vmem:[#allocation2 + $0x8] sm:$0xff]
    %v92 = vld [vmem:[#allocation4] sm:$0xff]
    %v93 = vld [vmem:[#allocation4 + $0x8] sm:$0xff]
    %v94 = vld [vmem:[#allocation4 + $0x10] sm:$0xff]
    %v95 = vld [vmem:[#allocation4 + $0x18] sm:$0xff]
    %v96 = vld [vmem:[#allocation4 + $0x20] sm:$0xff]
    %v97 = vld [vmem:[#allocation4 + $0x28] sm:$0xff]
    %v98 = vld [vmem:[#allocation4 + $0x30] sm:$0xff]
    %v99 = vld [vmem:[#allocation4 + $0x38] sm:$0xff]
    %v100 = vld [vmem:[#allocation4 + $0x40] sm:$0xff]
    %v101 = vld [vmem:[#allocation4 + $0x48] sm:$0xff]
    %v102 = vld [vmem:[#allocation4 + $0x50] sm:$0xff]
    %v103 = vld [vmem:[#allocation4 + $0x58] sm:$0xff]
    %v104 = vld [vmem:[#allocation4 + $0x60] sm:$0xff]
    %v105 = vld [vmem:[#allocation4 + $0x68] sm:$0xff]
    %v106 = vld [vmem:[#allocation4 + $0x70] sm:$0xff]
    %v107 = vld [vmem:[%s2] sm:$0x1]
    %v109 = vlaneseq
    %v110 = vshrl.u32 %v109, 7
    %v111 = vsub.s32 0, %v110
    %v112 = vrot.slane %v107, %v111
    %vm114 = vcmask 982016
    %v116 = vsel %vm114, %v90, 0
    %v119 = vsel %vm114, %v91, 0
    %121 = vmatprep.subr.mxu0 0.0
    %122 = vmatpush1.msra.mxu0 %v92
    %123 = vmatprep.subr.mxu0 0.0
    %124 = vmatpush1.msra.mxu0 %v93
    %125 = vmatprep.subr.mxu0 0.0
    %126 = vmatpush1.msra.mxu0 %v94
    %127 = vmatprep.subr.mxu0 0.0
    %128 = vmatpush1.msra.mxu0 %v95
    %129 = vmatprep.subr.mxu0 0.0
    %130 = vmatpush1.msra.mxu0 %v96
    %131 = vmatprep.subr.mxu0 0.0
    %132 = vmatpush1.msra.mxu0 %v97
    %133 = vmatprep.subr.mxu0 0.0
    %134 = vmatpush1.msra.mxu0 %v98
    %135 = vmatprep.subr.mxu0 0.0
    %136 = vmatpush1.msra.mxu0 %v99
    %137 = vmatprep.subr.mxu0 0.0
    %138 = vmatpush1.msra.mxu0 %v100
    %139 = vmatprep.subr.mxu0 0.0
    %140 = vmatpush1.msra.mxu0 %v101
    %141 = vmatprep.subr.mxu0 0.0
    %142 = vmatpush1.msra.mxu0 %v102
    %143 = vmatprep.subr.mxu0 0.0
    %144 = vmatpush1.msra.mxu0 %v103
    %145 = vmatprep.subr.mxu0 0.0
    %146 = vmatpush1.msra.mxu0 %v104
    %147 = vmatprep.subr.mxu0 0.0
    %148 = vmatpush1.msra.mxu0 %v105
    %149 = vmatprep.subr.mxu0 0.0
    %150 = vmatpush1.msra.mxu0 %v106
    %151 = vmatprep.subr.mxu0 0.0
    %152 = vmatpush1.msra.mxu0 0.0
    %153 = vmatprep.subr.mxu0 0.0
    %154 = vmatpush1.msra.mxu0 0.0
    %155 = vmatprep.subr.mxu0 0.0
    %156 = vmatpush1.msra.mxu0 0.0
    %157 = vmatprep.subr.mxu0 0.0
    %158 = vmatpush1.msra.mxu0 0.0
    %159 = vmatprep.subr.mxu0 0.0
    %160 = vmatpush1.msra.mxu0 0.0
    %161 = vmatprep.subr.mxu0 0.0
    %162 = vmatpush1.msra.mxu0 0.0
    %163 = vmatprep.subr.mxu0 0.0
    %164 = vmatpush1.msra.mxu0 0.0
    %165 = vmatprep.subr.mxu0 0.0
    %166 = vmatpush1.msra.mxu0 0.0
    %167 = vmatprep.subr.mxu0 0.0
    %168 = vmatpush1.msra.mxu0 0.0
    %169 = vmatprep.subr.mxu0 0.0
    %170 = vmatpush1.msra.mxu0 0.0
    %171 = vmatprep.subr.mxu0 0.0
    %172 = vmatpush1.msra.mxu0 0.0
    %173 = vmatprep.subr.mxu0 0.0
    %174 = vmatpush1.msra.mxu0 0.0
    %175 = vmatprep.subr.mxu0 0.0
    %176 = vmatpush1.msra.mxu0 0.0
    %177 = vmatprep.subr.mxu0 0.0
    %178 = vmatpush1.msra.mxu0 0.0
    %179 = vmatprep.subr.mxu0 0.0
    %180 = vmatpush1.msra.mxu0 0.0
    %181 = vmatprep.subr.mxu0 0.0
    %182 = vmatpush1.msra.mxu0 0.0
    %183 = vmatprep.subr.mxu0 0.0
    %184 = vmatpush1.msra.mxu0 0.0
    %185 = vmatprep.mubr.f32.mxu0 0.0
    %186 = vmatmul.mubr.f32.gmra.mrb[0].mxu0 %v116
    %v187 = vpop.f32.mrb[0].mxu0
    %v188 = vadd.f32 %v112, %v187
    %v189 = vpop.f32.mrb[0].mxu0
    %190 = vmatprep.mubr.f32.mxu0 0.0
    %191 = vmatmul.mubr.f32.gmra.mrb[0].mxu0 %v119
    %v192 = vpop.f32.mrb[0].mxu0
    %v193 = vadd.f32 %v112, %v192
    %v194 = vpop.f32.mrb[0].mxu0
    %195 = vdwg.mxu0
    %v196 = vmax.f32 %v188, 0.0
    %v197 = vmax.f32 %v193, 0.0
    %v198 = vand.u32 2147483647, %v188
    %v199 = vand.u32 2147483647, %v193
    %v200 = vsub.f32 0.0, %v198
    %v201 = vsub.f32 0.0, %v199
    %v202 = vmul.f32 %v200, 1.442695
    %v203 = vpow.pop %v202
    %v204 = vmul.f32 %v201, 1.442695
    %v205 = vpow.pop %v204
    %v206 = vadd.f32 %v203, 1.0
    %v207 = vlog2.pop %v206
    %v208 = vmul.f32 %v207, 0.6931472
    %v209 = vmul.f32 -0.5, %v203
    %v210 = vadd.f32 %v209, 1.0
    %v211 = vmul.f32 %v210, %v203
    %v212 = vand.u32 2147483647, %v203
    %vm213 = vcmp.lt.f32.partialorder %v212, 0.0004427343
    %v214 = vsel %vm213, %v211, %v208
    %v215 = vadd.f32 %v205, 1.0
    %v216 = vlog2.pop %v215
    %v217 = vmul.f32 %v216, 0.6931472
    %v218 = vmul.f32 -0.5, %v205
    %v219 = vadd.f32 %v218, 1.0
    %v220 = vmul.f32 %v219, %v205
    %v221 = vand.u32 2147483647, %v205
    %vm222 = vcmp.lt.f32.partialorder %v221, 0.0004427343
    %v223 = vsel %vm222, %v220, %v217
    %v224 = vadd.f32 %v196, %v214
    %v225 = vadd.f32 %v197, %v223
    %v226 = vld [vmem:[%s3] sm:$0xff]
    %v227 = vld [vmem:[%s3 + $0x8] sm:$0xff]
    %v228 = vld [vmem:[%s3 + $0x10] sm:$0xff]
    %v229 = vld [vmem:[%s3 + $0x18] sm:$0xff]
    %v230 = vld [vmem:[%s3 + $0x20] sm:$0xff]
    %v231 = vld [vmem:[%s3 + $0x28] sm:$0xff]
    %v232 = vld [vmem:[%s3 + $0x30] sm:$0xff]
    %v233 = vld [vmem:[%s3 + $0x38] sm:$0xff]
    %v234 = vld [vmem:[%s3 + $0x40] sm:$0xff]
    %v235 = vld [vmem:[%s3 + $0x48] sm:$0xff]
    %v236 = vld [vmem:[%s3 + $0x50] sm:$0xff]
    %v237 = vld [vmem:[%s3 + $0x58] sm:$0xff]
    %v238 = vld [vmem:[%s3 + $0x60] sm:$0xff]
    %v239 = vld [vmem:[%s3 + $0x68] sm:$0xff]
    %v240 = vld [vmem:[%s3 + $0x70] sm:$0xff]
    %v241 = vld [vmem:[%s3 + $0x78] sm:$0xff]
    %v242 = vld [vmem:[%s4] sm:$0x1]
    %v244 = vlaneseq
    %v245 = vshrl.u32 %v244, 7
    %v246 = vsub.s32 0, %v245
    %v247 = vrot.slane %v242, %v246
    %249 = vmatprep.subr.mxu0 0.0
    %250 = vmatpush1.msra.mxu0 %v226
    %251 = vmatprep.subr.mxu0 0.0
    %252 = vmatpush1.msra.mxu0 %v227
    %253 = vmatprep.subr.mxu0 0.0
    %254 = vmatpush1.msra.mxu0 %v228
    %255 = vmatprep.subr.mxu0 0.0
    %256 = vmatpush1.msra.mxu0 %v229
    %257 = vmatprep.subr.mxu0 0.0
    %258 = vmatpush1.msra.mxu0 %v230
    %259 = vmatprep.subr.mxu0 0.0
    %260 = vmatpush1.msra.mxu0 %v231
    %261 = vmatprep.subr.mxu0 0.0
    %262 = vmatpush1.msra.mxu0 %v232
    %263 = vmatprep.subr.mxu0 0.0
    %264 = vmatpush1.msra.mxu0 %v233
    %265 = vmatprep.subr.mxu0 0.0
    %266 = vmatpush1.msra.mxu0 %v234
    %267 = vmatprep.subr.mxu0 0.0
    %268 = vmatpush1.msra.mxu0 %v235
    %269 = vmatprep.subr.mxu0 0.0
    %270 = vmatpush1.msra.mxu0 %v236
    %271 = vmatprep.subr.mxu0 0.0
    %272 = vmatpush1.msra.mxu0 %v237
    %273 = vmatprep.subr.mxu0 0.0
    %274 = vmatpush1.msra.mxu0 %v238
    %275 = vmatprep.subr.mxu0 0.0
    %276 = vmatpush1.msra.mxu0 %v239
    %277 = vmatprep.subr.mxu0 0.0
    %278 = vmatpush1.msra.mxu0 %v240
    %279 = vmatprep.subr.mxu0 0.0
    %280 = vmatpush1.msra.mxu0 %v241
    %281 = vmatprep.subr.mxu0 0.0
    %282 = vmatpush1.msra.mxu0 0.0
    %283 = vmatprep.subr.mxu0 0.0
    %284 = vmatpush1.msra.mxu0 0.0
    %285 = vmatprep.subr.mxu0 0.0
    %286 = vmatpush1.msra.mxu0 0.0
    %287 = vmatprep.subr.mxu0 0.0
    %288 = vmatpush1.msra.mxu0 0.0
    %289 = vmatprep.subr.mxu0 0.0
    %290 = vmatpush1.msra.mxu0 0.0
    %291 = vmatprep.subr.mxu0 0.0
    %292 = vmatpush1.msra.mxu0 0.0
    %293 = vmatprep.subr.mxu0 0.0
    %294 = vmatpush1.msra.mxu0 0.0
    %295 = vmatprep.subr.mxu0 0.0
    %296 = vmatpush1.msra.mxu0 0.0
    %297 = vmatprep.subr.mxu0 0.0
    %298 = vmatpush1.msra.mxu0 0.0
    %299 = vmatprep.subr.mxu0 0.0
    %300 = vmatpush1.msra.mxu0 0.0
    %301 = vmatprep.subr.mxu0 0.0
    %302 = vmatpush1.msra.mxu0 0.0
    %303 = vmatprep.subr.mxu0 0.0
    %304 = vmatpush1.msra.mxu0 0.0
    %305 = vmatprep.subr.mxu0 0.0
    %306 = vmatpush1.msra.mxu0 0.0
    %307 = vmatprep.subr.mxu0 0.0
    %308 = vmatpush1.msra.mxu0 0.0
    %309 = vmatprep.subr.mxu0 0.0
    %310 = vmatpush1.msra.mxu0 0.0
    %311 = vmatprep.subr.mxu0 0.0
    %312 = vmatpush1.msra.mxu0 0.0
    %313 = vmatprep.mubr.f32.mxu0 0.0
    %314 = vmatmul.mubr.f32.gmra.mrb[0].mxu0 %v224
    %v315 = vpop.f32.mrb[0].mxu0
    %v316 = vadd.f32 %v247, %v315
    %v317 = vpop.f32.mrb[0].mxu0
    %318 = vmatprep.mubr.f32.mxu0 0.0
    %319 = vmatmul.mubr.f32.gmra.mrb[0].mxu0 %v225
    %v320 = vpop.f32.mrb[0].mxu0
    %v321 = vadd.f32 %v247, %v320
    %v322 = vpop.f32.mrb[0].mxu0
    %323 = vdwg.mxu0
    %v324 = vmax.f32 %v316, 0.0
    %v325 = vmax.f32 %v321, 0.0
    %v326 = vand.u32 2147483647, %v316
    %v327 = vand.u32 2147483647, %v321
    %v328 = vsub.f32 0.0, %v326
    %v329 = vsub.f32 0.0, %v327
    %v330 = vmul.f32 %v328, 1.442695
    %v331 = vpow.pop %v330
    %v332 = vmul.f32 %v329, 1.442695
    %v333 = vpow.pop %v332
    %v334 = vadd.f32 %v331, 1.0
    %v335 = vlog2.pop %v334
    %v336 = vmul.f32 %v335, 0.6931472
    %v337 = vmul.f32 -0.5, %v331
    %v338 = vadd.f32 %v337, 1.0
    %v339 = vmul.f32 %v338, %v331
    %v340 = vand.u32 2147483647, %v331
    %vm341 = vcmp.lt.f32.partialorder %v340, 0.0004427343
    %v342 = vsel %vm341, %v339, %v336
    %v343 = vadd.f32 %v333, 1.0
    %v344 = vlog2.pop %v343
    %v345 = vmul.f32 %v344, 0.6931472
    %v346 = vmul.f32 -0.5, %v333
    %v347 = vadd.f32 %v346, 1.0
    %v348 = vmul.f32 %v347, %v333
    %v349 = vand.u32 2147483647, %v333
    %vm350 = vcmp.lt.f32.partialorder %v349, 0.0004427343
    %v351 = vsel %vm350, %v348, %v345
    %v352 = vadd.f32 %v324, %v342
    %v353 = vadd.f32 %v325, %v351
    %v354 = vld [vmem:[#allocation6] sm:$0xff]
    %v355 = vld [vmem:[#allocation6 + $0x8] sm:$0xff]
    %v356 = vld [vmem:[#allocation6 + $0x10] sm:$0xff]
    %v357 = vld [vmem:[#allocation6 + $0x18] sm:$0xff]
    %v358 = vld [vmem:[#allocation6 + $0x20] sm:$0xff]
    %v359 = vld [vmem:[#allocation6 + $0x28] sm:$0xff]
    %v360 = vld [vmem:[#allocation6 + $0x30] sm:$0xff]
    %v361 = vld [vmem:[#allocation6 + $0x38] sm:$0xff]
    %v362 = vld [vmem:[#allocation6 + $0x40] sm:$0xff]
    %v363 = vld [vmem:[#allocation6 + $0x48] sm:$0xff]
    %v364 = vld [vmem:[#allocation6 + $0x50] sm:$0xff]
    %v365 = vld [vmem:[#allocation6 + $0x58] sm:$0xff]
    %v366 = vld [vmem:[#allocation6 + $0x60] sm:$0xff]
    %v367 = vld [vmem:[#allocation6 + $0x68] sm:$0xff]
    %v368 = vld [vmem:[#allocation6 + $0x70] sm:$0xff]
    %v369 = vld [vmem:[#allocation6 + $0x78] sm:$0xff]
    %v370 = vld [vmem:[%s6] sm:$0x1]
    %v372 = vlaneseq
    %v373 = vshrl.u32 %v372, 7
    %v374 = vsub.s32 0, %v373
    %v375 = vrot.slane %v370, %v374
    %377 = vmatprep.subr.mxu0 0.0
    %378 = vmatpush1.msra.mxu0 %v354
    %379 = vmatprep.subr.mxu0 0.0
    %380 = vmatpush1.msra.mxu0 %v355
    %381 = vmatprep.subr.mxu0 0.0
    %382 = vmatpush1.msra.mxu0 %v356
    %383 = vmatprep.subr.mxu0 0.0
    %384 = vmatpush1.msra.mxu0 %v357
    %385 = vmatprep.subr.mxu0 0.0
    %386 = vmatpush1.msra.mxu0 %v358
    %387 = vmatprep.subr.mxu0 0.0
    %388 = vmatpush1.msra.mxu0 %v359
    %389 = vmatprep.subr.mxu0 0.0
    %390 = vmatpush1.msra.mxu0 %v360
    %391 = vmatprep.subr.mxu0 0.0
    %392 = vmatpush1.msra.mxu0 %v361
    %393 = vmatprep.subr.mxu0 0.0
    %394 = vmatpush1.msra.mxu0 %v362
    %395 = vmatprep.subr.mxu0 0.0
    %396 = vmatpush1.msra.mxu0 %v363
    %397 = vmatprep.subr.mxu0 0.0
    %398 = vmatpush1.msra.mxu0 %v364
    %399 = vmatprep.subr.mxu0 0.0
    %400 = vmatpush1.msra.mxu0 %v365
    %401 = vmatprep.subr.mxu0 0.0
    %402 = vmatpush1.msra.mxu0 %v366
    %403 = vmatprep.subr.mxu0 0.0
    %404 = vmatpush1.msra.mxu0 %v367
    %405 = vmatprep.subr.mxu0 0.0
    %406 = vmatpush1.msra.mxu0 %v368
    %407 = vmatprep.subr.mxu0 0.0
    %408 = vmatpush1.msra.mxu0 %v369
    %409 = vmatprep.subr.mxu0 0.0
    %410 = vmatpush1.msra.mxu0 0.0
    %411 = vmatprep.subr.mxu0 0.0
    %412 = vmatpush1.msra.mxu0 0.0
    %413 = vmatprep.subr.mxu0 0.0
    %414 = vmatpush1.msra.mxu0 0.0
    %415 = vmatprep.subr.mxu0 0.0
    %416 = vmatpush1.msra.mxu0 0.0
    %417 = vmatprep.subr.mxu0 0.0
    %418 = vmatpush1.msra.mxu0 0.0
    %419 = vmatprep.subr.mxu0 0.0
    %420 = vmatpush1.msra.mxu0 0.0
    %421 = vmatprep.subr.mxu0 0.0
    %422 = vmatpush1.msra.mxu0 0.0
    %423 = vmatprep.subr.mxu0 0.0
    %424 = vmatpush1.msra.mxu0 0.0
    %425 = vmatprep.subr.mxu0 0.0
    %426 = vmatpush1.msra.mxu0 0.0
    %427 = vmatprep.subr.mxu0 0.0
    %428 = vmatpush1.msra.mxu0 0.0
    %429 = vmatprep.subr.mxu0 0.0
    %430 = vmatpush1.msra.mxu0 0.0
    %431 = vmatprep.subr.mxu0 0.0
    %432 = vmatpush1.msra.mxu0 0.0
    %433 = vmatprep.subr.mxu0 0.0
    %434 = vmatpush1.msra.mxu0 0.0
    %435 = vmatprep.subr.mxu0 0.0
    %436 = vmatpush1.msra.mxu0 0.0
    %437 = vmatprep.subr.mxu0 0.0
    %438 = vmatpush1.msra.mxu0 0.0
    %439 = vmatprep.subr.mxu0 0.0
    %440 = vmatpush1.msra.mxu0 0.0
    %441 = vmatprep.mubr.f32.mxu0 0.0
    %442 = vmatmul.mubr.f32.gmra.mrb[0].mxu0 %v352
    %v443 = vpop.f32.mrb[0].mxu0
    %v444 = vadd.f32 %v375, %v443
    %v445 = vpop.f32.mrb[0].mxu0
    %446 = vmatprep.mubr.f32.mxu0 0.0
    %447 = vmatmul.mubr.f32.gmra.mrb[0].mxu0 %v353
    %v448 = vpop.f32.mrb[0].mxu0
    %v449 = vadd.f32 %v375, %v448
    %v450 = vpop.f32.mrb[0].mxu0
    %451 = vdwg.mxu0
    %v452 = vtanh.pop %v444
    %v453 = vtanh.pop %v449
    %v454 = vsub.f32 %v444, %v452
    %v455 = vsub.f32 %v449, %v453
    %v456 = vld [vmem:[#allocation7] sm:$0xff]
    %v457 = vld [vmem:[#allocation7 + $0x8] sm:$0xff]
    %v458 = vld [vmem:[#allocation7 + $0x10] sm:$0xff]
    %v459 = vld [vmem:[#allocation7 + $0x18] sm:$0xff]
    %v460 = vld [vmem:[#allocation7 + $0x20] sm:$0xff]
    %v461 = vld [vmem:[#allocation7 + $0x28] sm:$0xff]
    %v462 = vld [vmem:[#allocation7 + $0x30] sm:$0xff]
    %v463 = vld [vmem:[#allocation7 + $0x38] sm:$0xff]
    %v464 = vld [vmem:[#allocation7 + $0x40] sm:$0xff]
    %v465 = vld [vmem:[#allocation7 + $0x48] sm:$0xff]
    %v466 = vld [vmem:[#allocation7 + $0x50] sm:$0xff]
    %v467 = vld [vmem:[#allocation7 + $0x58] sm:$0xff]
    %v468 = vld [vmem:[#allocation7 + $0x60] sm:$0xff]
    %v469 = vld [vmem:[#allocation7 + $0x68] sm:$0xff]
    %v470 = vld [vmem:[#allocation7 + $0x70] sm:$0xff]
    %v471 = vld [vmem:[#allocation7 + $0x78] sm:$0xff]
    %v472 = vld [vmem:[%s8] sm:$0x1]
    %v474 = vlaneseq
    %v475 = vshrl.u32 %v474, 7
    %v476 = vsub.s32 0, %v475
    %v477 = vrot.slane %v472, %v476
    %479 = vmatprep.subr.mxu0 0.0
    %480 = vmatpush1.msra.mxu0 %v456
    %481 = vmatprep.subr.mxu0 0.0
    %482 = vmatpush1.msra.mxu0 %v457
    %483 = vmatprep.subr.mxu0 0.0
    %484 = vmatpush1.msra.mxu0 %v458
    %485 = vmatprep.subr.mxu0 0.0
    %486 = vmatpush1.msra.mxu0 %v459
    %487 = vmatprep.subr.mxu0 0.0
    %488 = vmatpush1.msra.mxu0 %v460
    %489 = vmatprep.subr.mxu0 0.0
    %490 = vmatpush1.msra.mxu0 %v461
    %491 = vmatprep.subr.mxu0 0.0
    %492 = vmatpush1.msra.mxu0 %v462
    %493 = vmatprep.subr.mxu0 0.0
    %494 = vmatpush1.msra.mxu0 %v463
    %495 = vmatprep.subr.mxu0 0.0
    %496 = vmatpush1.msra.mxu0 %v464
    %497 = vmatprep.subr.mxu0 0.0
    %498 = vmatpush1.msra.mxu0 %v465
    %499 = vmatprep.subr.mxu0 0.0
    %500 = vmatpush1.msra.mxu0 %v466
    %501 = vmatprep.subr.mxu0 0.0
    %502 = vmatpush1.msra.mxu0 %v467
    %503 = vmatprep.subr.mxu0 0.0
    %504 = vmatpush1.msra.mxu0 %v468
    %505 = vmatprep.subr.mxu0 0.0
    %506 = vmatpush1.msra.mxu0 %v469
    %507 = vmatprep.subr.mxu0 0.0
    %508 = vmatpush1.msra.mxu0 %v470
    %509 = vmatprep.subr.mxu0 0.0
    %510 = vmatpush1.msra.mxu0 %v471
    %511 = vmatprep.subr.mxu0 0.0
    %512 = vmatpush1.msra.mxu0 0.0
    %513 = vmatprep.subr.mxu0 0.0
    %514 = vmatpush1.msra.mxu0 0.0
    %515 = vmatprep.subr.mxu0 0.0
    %516 = vmatpush1.msra.mxu0 0.0
    %517 = vmatprep.subr.mxu0 0.0
    %518 = vmatpush1.msra.mxu0 0.0
    %519 = vmatprep.subr.mxu0 0.0
    %520 = vmatpush1.msra.mxu0 0.0
    %521 = vmatprep.subr.mxu0 0.0
    %522 = vmatpush1.msra.mxu0 0.0
    %523 = vmatprep.subr.mxu0 0.0
    %524 = vmatpush1.msra.mxu0 0.0
    %525 = vmatprep.subr.mxu0 0.0
    %526 = vmatpush1.msra.mxu0 0.0
    %527 = vmatprep.subr.mxu0 0.0
    %528 = vmatpush1.msra.mxu0 0.0
    %529 = vmatprep.subr.mxu0 0.0
    %530 = vmatpush1.msra.mxu0 0.0
    %531 = vmatprep.subr.mxu0 0.0
    %532 = vmatpush1.msra.mxu0 0.0
    %533 = vmatprep.subr.mxu0 0.0
    %534 = vmatpush1.msra.mxu0 0.0
    %535 = vmatprep.subr.mxu0 0.0
    %536 = vmatpush1.msra.mxu0 0.0
    %537 = vmatprep.subr.mxu0 0.0
    %538 = vmatpush1.msra.mxu0 0.0
    %539 = vmatprep.subr.mxu0 0.0
    %540 = vmatpush1.msra.mxu0 0.0
    %541 = vmatprep.subr.mxu0 0.0
    %542 = vmatpush1.msra.mxu0 0.0
    %543 = vmatprep.mubr.f32.mxu0 0.0
    %544 = vmatmul.mubr.f32.gmra.mrb[0].mxu0 %v454
    %v545 = vpop.f32.mrb[0].mxu0
    %v546 = vadd.f32 %v477, %v545
    %v547 = vpop.f32.mrb[0].mxu0
    %548 = vmatprep.mubr.f32.mxu0 0.0
    %549 = vmatmul.mubr.f32.gmra.mrb[0].mxu0 %v455
    %v550 = vpop.f32.mrb[0].mxu0
    %v551 = vadd.f32 %v477, %v550
    %v552 = vpop.f32.mrb[0].mxu0
    %553 = vdwg.mxu0
    %v554 = vsub.f32 0.0, %v546
    %v555 = vsub.f32 0.0, %v551
    %v556 = vmul.f32 %v554, 1.442695
    %v557 = vpow.pop %v556
    %v558 = vmul.f32 %v555, 1.442695
    %v559 = vpow.pop %v558
    %v560 = vadd.f32 %v557, 1.0
    %v561 = vadd.f32 %v559, 1.0
    %v562 = vrcp.pop %v560
    %v563 = vmul.f32 1.0, %v562
    %v564 = vrcp.pop %v561
    %v565 = vmul.f32 1.0, %v564
    %v566 = vld [vmem:[%s9] sm:$0xff]
    %v567 = vld [vmem:[%s9 + $0x8] sm:$0xff]
    %v568 = vld [vmem:[%s9 + $0x10] sm:$0xff]
    %v569 = vld [vmem:[%s9 + $0x18] sm:$0xff]
    %v570 = vld [vmem:[%s9 + $0x20] sm:$0xff]
    %v571 = vld [vmem:[%s9 + $0x28] sm:$0xff]
    %v572 = vld [vmem:[%s9 + $0x30] sm:$0xff]
    %v573 = vld [vmem:[%s9 + $0x38] sm:$0xff]
    %v574 = vld [vmem:[%s9 + $0x40] sm:$0xff]
    %v575 = vld [vmem:[%s9 + $0x48] sm:$0xff]
    %v576 = vld [vmem:[%s9 + $0x50] sm:$0xff]
    %v577 = vld [vmem:[%s9 + $0x58] sm:$0xff]
    %v578 = vld [vmem:[%s9 + $0x60] sm:$0xff]
    %v579 = vld [vmem:[%s9 + $0x68] sm:$0xff]
    %v580 = vld [vmem:[%s9 + $0x70] sm:$0xff]
    %v581 = vld [vmem:[%s9 + $0x78] sm:$0xff]
    %582 = vmatprep.subr.mxu0 0.0
    %583 = vmatpush1.msra.mxu0 %v566
    %584 = vmatprep.subr.mxu0 0.0
    %585 = vmatpush1.msra.mxu0 %v567
    %586 = vmatprep.subr.mxu0 0.0
    %587 = vmatpush1.msra.mxu0 %v568
    %588 = vmatprep.subr.mxu0 0.0
    %589 = vmatpush1.msra.mxu0 %v569
    %590 = vmatprep.subr.mxu0 0.0
    %591 = vmatpush1.msra.mxu0 %v570
    %592 = vmatprep.subr.mxu0 0.0
    %593 = vmatpush1.msra.mxu0 %v571
    %594 = vmatprep.subr.mxu0 0.0
    %595 = vmatpush1.msra.mxu0 %v572
    %596 = vmatprep.subr.mxu0 0.0
    %597 = vmatpush1.msra.mxu0 %v573
    %598 = vmatprep.subr.mxu0 0.0
    %599 = vmatpush1.msra.mxu0 %v574
    %600 = vmatprep.subr.mxu0 0.0
    %601 = vmatpush1.msra.mxu0 %v575
    %602 = vmatprep.subr.mxu0 0.0
    %603 = vmatpush1.msra.mxu0 %v576
    %604 = vmatprep.subr.mxu0 0.0
    %605 = vmatpush1.msra.mxu0 %v577
    %606 = vmatprep.subr.mxu0 0.0
    %607 = vmatpush1.msra.mxu0 %v578
    %608 = vmatprep.subr.mxu0 0.0
    %609 = vmatpush1.msra.mxu0 %v579
    %610 = vmatprep.subr.mxu0 0.0
    %611 = vmatpush1.msra.mxu0 %v580
    %612 = vmatprep.subr.mxu0 0.0
    %613 = vmatpush1.msra.mxu0 %v581
    %614 = vmatprep.subr.mxu0 0.0
    %615 = vmatpush1.msra.mxu0 0.0
    %616 = vmatprep.subr.mxu0 0.0
    %617 = vmatpush1.msra.mxu0 0.0
    %618 = vmatprep.subr.mxu0 0.0
    %619 = vmatpush1.msra.mxu0 0.0
    %620 = vmatprep.subr.mxu0 0.0
    %621 = vmatpush1.msra.mxu0 0.0
    %622 = vmatprep.subr.mxu0 0.0
    %623 = vmatpush1.msra.mxu0 0.0
    %624 = vmatprep.subr.mxu0 0.0
    %625 = vmatpush1.msra.mxu0 0.0
    %626 = vmatprep.subr.mxu0 0.0
    %627 = vmatpush1.msra.mxu0 0.0
    %628 = vmatprep.subr.mxu0 0.0
    %629 = vmatpush1.msra.mxu0 0.0
    %630 = vmatprep.subr.mxu0 0.0
    %631 = vmatpush1.msra.mxu0 0.0
    %632 = vmatprep.subr.mxu0 0.0
    %633 = vmatpush1.msra.mxu0 0.0
    %634 = vmatprep.subr.mxu0 0.0
    %635 = vmatpush1.msra.mxu0 0.0
    %636 = vmatprep.subr.mxu0 0.0
    %637 = vmatpush1.msra.mxu0 0.0
    %638 = vmatprep.subr.mxu0 0.0
    %639 = vmatpush1.msra.mxu0 0.0
    %640 = vmatprep.subr.mxu0 0.0
    %641 = vmatpush1.msra.mxu0 0.0
    %642 = vmatprep.subr.mxu0 0.0
    %643 = vmatpush1.msra.mxu0 0.0
    %644 = vmatprep.subr.mxu0 0.0
    %645 = vmatpush1.msra.mxu0 0.0
    %646 = vmatprep.mubr.f32.mxu0 0.0
    %647 = vmatmul.mubr.f32.gmra.mrb[0].mxu0 %v563
    %v648 = vpop.f32.mrb[0].mxu0
    %v649 = vadd.f32 0.0, %v648
    %v650 = vpop.f32.mrb[0].mxu0
    %651 = vmatprep.mubr.f32.mxu0 0.0
    %652 = vmatmul.mubr.f32.gmra.mrb[0].mxu0 %v565
    %v653 = vpop.f32.mrb[0].mxu0
    %v654 = vadd.f32 0.0, %v653
    %v655 = vpop.f32.mrb[0].mxu0
    %656 = vdwg.mxu0
    %vm657 = vcmask 7168
    %658 = vst.msk [vmem:[%s10] sm:$0xff] %vm657, %v649
    %659 = vst.msk [vmem:[%s10 + $0x8] sm:$0xff] %vm657, %v654
    // Predicated region
    $region58: #{tpu_custom_call.1} parent=1 // pred_check
      _
    $region59: #{tpu_custom_call.1} parent=1 // pred_check_branch
      %661 = sbr.rel (0) target = $region61
    $region60: #{tpu_custom_call.1} parent=1 // pred_region
      _
    $region61: #{tpu_custom_call.1} parent=1 // pred_fallthru
      _
    // Predicated region
    $region62: #{tpu_custom_call.1} parent=1 // pred_check
      _
    $region63: #{tpu_custom_call.1} parent=1 // pred_check_branch
      %663 = sbr.rel (0) target = $region65
    $region64: #{tpu_custom_call.1} parent=1 // pred_region
      _
    $region65: #{tpu_custom_call.1} parent=1 // pred_fallthru
      _
    %664 = vsyncpa [#allocation3], 1
    %665 = vsyncpa [#allocation5], 1
    %666 = vsyncpa [#allocation8], 1

</llo_original>
